<compile_context>
chip_gen: v7x
topology: tpu7x:2x2x1
jax: 0.10.0
libtpu: 0.0.40
codegen_flags: <defaults>
</compile_context>

<pallas_src>
import functools

import jax
import jax.numpy as jnp
from jax.experimental import pallas as pl
from jax.experimental.pallas import tpu as pltpu


def _round_up(x: int, m: int) -> int:
    return ((x + m - 1) // m) * m


def _mlp_kernel(x_ref, w1_ref, b1_ref, w2_ref, b2_ref, w3_ref, b3_ref, o_ref,
                *, negative_slope: float, classification: bool, d_out: int):
    # x_ref: (TM, d_in) batch tile; weights/biases: full arrays, VMEM-resident
    # across grid steps (constant index_map).  No per-step dtype casts of the
    # operands: MXU gets native-dtype inputs, accumulates in f32.
    x = x_ref[...]

    h = jnp.dot(x, w1_ref[...], preferred_element_type=jnp.float32) + b1_ref[...]
    h = jnp.where(h > 0, h, negative_slope * h)            # LeakyReLU (f32)
    h = h.astype(w2_ref.dtype)

    h = jnp.dot(h, w2_ref[...], preferred_element_type=jnp.float32) + b2_ref[...]
    h = jnp.where(h > 0, h, negative_slope * h)            # LeakyReLU (f32)
    h = h.astype(w3_ref.dtype)

    out = jnp.dot(h, w3_ref[...], preferred_element_type=jnp.float32) + b3_ref[...]

    if classification:
        d_out_pad = out.shape[-1]
        if d_out_pad != d_out:
            # Padded logit columns (zero weights/bias) must not leak into the
            # softmax denominator.
            col = jax.lax.broadcasted_iota(jnp.int32, out.shape, 1)
            out = jnp.where(col < d_out, out, -1e30)
        out = out - jnp.max(out, axis=-1, keepdims=True)
        e = jnp.exp(out)
        denom = jnp.sum(e, axis=-1, keepdims=True)
        out = e * pl.reciprocal(denom, approx=True)        # EUP, not VPU divide

    o_ref[...] = out.astype(o_ref.dtype)


def mlp_forward(x, w1, b1, w2, b2, w3, b3, *,
                classification: bool = False,
                negative_slope: float = 0.01,
                batch_block: int = 512):
    """Forward pass of the MLP. x: (B, input_features, pre_days) (or any (B, ...))."""
    B = x.shape[0]
    x2 = x.reshape(B, -1)                                  # nn.Flatten
    d_in = x2.shape[1]
    hidden = w1.shape[1]
    d_out = w3.shape[1]
    assert w1.shape == (d_in, hidden)
    assert w2.shape == (hidden, hidden)
    assert w3.shape == (hidden, d_out)

    # --- batch tiling ---------------------------------------------------------
    # Sublane packing of the activation dtype: f32 -> 8 rows, bf16 -> 16, i8 -> 32.
    sublane = {4: 8, 2: 16, 1: 32}.get(x2.dtype.itemsize, 8)
    b_al = _round_up(B, sublane)
    tm = min(batch_block, b_al)
    # Give the "parallel" batch axis >= 2 grid steps when B allows, so both
    # v7x TensorCores get work (harmless no-op on v5e/v6e).
    if b_al // tm < 2 and b_al >= 2 * sublane:
        tm = _round_up(pl.cdiv(b_al, 2), sublane)
    b_pad = _round_up(B, tm)
    if b_pad != B:
        x2 = jnp.pad(x2, ((0, b_pad - B), (0, 0)))
    grid = (b_pad // tm,)

    # --- lane-dense output: pad layer-3 feature dim to a multiple of 128 -------
    d_out_pad = _round_up(d_out, 128)
    if d_out_pad != d_out:
        w3 = jnp.pad(w3, ((0, 0), (0, d_out_pad - d_out)))
        b3 = jnp.pad(b3, ((0, d_out_pad - d_out),))

    # 2-D biases so their blocks are trivially layout-legal.
    b1_2 = b1.reshape(1, hidden)
    b2_2 = b2.reshape(1, hidden)
    b3_2 = b3.reshape(1, d_out_pad)

    # --- VMEM budget (weights single-buffered, x/out double-buffered) ----------
    wb = jnp.dtype(w1.dtype).itemsize
    xb = jnp.dtype(x2.dtype).itemsize
    weight_bytes = (d_in * hidden + hidden * hidden + hidden * d_out_pad
                    + 2 * hidden + d_out_pad) * wb
    tile_bytes = 2 * tm * d_in * xb + 2 * tm * d_out_pad * xb
    vmem_limit = int(min(max(1.5 * (weight_bytes + tile_bytes) + (2 << 20), 16 << 20),
                         64 << 20))                        # cap at v7x physical VMEM
    # TODO(synk): for very large hidden/d_in (resident weights > ~24 MiB) add a
    # K/N-tiled fallback (grid over hidden) so the kernel still fits v7x's 64 MiB.

    kernel = functools.partial(_mlp_kernel,
                               negative_slope=negative_slope,
                               classification=classification,
                               d_out=d_out)

    def build(single_buffer_weights: bool):
        if single_buffer_weights:
            def wspec(shape):
                # Grid-invariant: single-buffered to halve resident VMEM.
                return pl.BlockSpec(shape, lambda i: (0, 0),
                                    pipeline_mode=pl.Buffered(1))
        else:
            def wspec(shape):
                return pl.BlockSpec(shape, lambda i: (0, 0))
        return pl.pallas_call(
            kernel,
            out_shape=jax.ShapeDtypeStruct((b_pad, d_out_pad), x.dtype),
            grid=grid,
            in_specs=[
                pl.BlockSpec((tm, d_in), lambda i: (i, 0)),   # x tile (pipelined)
                wspec((d_in, hidden)),                        # w1 (VMEM-resident)
                wspec((1, hidden)),                           # b1
                wspec((hidden, hidden)),                      # w2
                wspec((1, hidden)),                           # b2
                wspec((hidden, d_out_pad)),                   # w3 (lane-padded)
                wspec((1, d_out_pad)),                        # b3
            ],
            out_specs=pl.BlockSpec((tm, d_out_pad), lambda i: (i, 0)),
            compiler_params=pltpu.CompilerParams(
                dimension_semantics=("parallel",),            # v7x: batch over 2 TCs
                vmem_limit_bytes=vmem_limit),
        )

    args = (x2, w1, b1_2, w2, b2_2, w3, b3_2)
    try:
        out = build(True)(*args)
    except Exception:
        # Fallback for JAX builds where pl.Buffered(1) single-buffering is not
        # supported on this path; only costs extra (double-buffered) VMEM.
        out = build(False)(*args)

    return out[:B, :d_out]


if __name__ == "__main__":
    key = jax.random.PRNGKey(0)
    B, input_features, pre_days = 2, 4, 8
    hidden_dim, output_dim = 32, 8
    d_in = input_features * pre_days

    ks = jax.random.split(key, 7)
    x = jax.random.normal(ks[0], (B, input_features, pre_days), dtype=jnp.float32)
    w1 = jax.random.normal(ks[1], (d_in, hidden_dim), dtype=jnp.float32) * 0.1
    b1 = jax.random.normal(ks[2], (hidden_dim,), dtype=jnp.float32) * 0.1
    w2 = jax.random.normal(ks[3], (hidden_dim, hidden_dim), dtype=jnp.float32) * 0.1
    b2 = jax.random.normal(ks[4], (hidden_dim,), dtype=jnp.float32) * 0.1
    w3 = jax.random.normal(ks[5], (hidden_dim, output_dim), dtype=jnp.float32) * 0.1
    b3 = jax.random.normal(ks[6], (output_dim,), dtype=jnp.float32) * 0.1

    # Pure-JAX reference (same semantics as the PyTorch MLP.forward).
    def leaky(v):
        return jnp.where(v > 0, v, 0.01 * v)

    xf = x.reshape(B, -1)
    h = leaky(xf @ w1 + b1)
    h = leaky(h @ w2 + b2)
    logits_ref = h @ w3 + b3

    # Regression head (classification=False, the PyTorch default).
    y = mlp_forward(x, w1, b1, w2, b2, w3, b3, classification=False)
    y = jax.block_until_ready(y)
    assert y.shape == (B, output_dim)
    assert bool(jnp.all(jnp.isfinite(y)))
    assert jnp.allclose(y, logits_ref, atol=1e-4, rtol=1e-4), \
        float(jnp.max(jnp.abs(y - logits_ref)))

    # Classification head: softmax over masked, lane-padded logits.
    p = mlp_forward(x, w1, b1, w2, b2, w3, b3, classification=True)
    p = jax.block_until_ready(p)
    p_ref = jax.nn.softmax(logits_ref, axis=1)
    assert p.shape == (B, output_dim)
    assert bool(jnp.allclose(jnp.sum(p, axis=1), 1.0, atol=2e-3))
    assert jnp.allclose(p, p_ref, atol=2e-3), float(jnp.max(jnp.abs(p - p_ref)))

    print("KERNEL_OK")
</pallas_src>

<mosaic_0001>
module attributes {stable_mosaic.version = 11 : i64} {
  func.func @_mlp_kernel(%arg0: i32, %arg1: memref<8x32xf32, #tpu.memory_space<vmem>>, %arg2: memref<32x32xf32, #tpu.memory_space<vmem>>, %arg3: memref<1x32xf32, #tpu.memory_space<vmem>>, %arg4: memref<32x32xf32, #tpu.memory_space<vmem>>, %arg5: memref<1x32xf32, #tpu.memory_space<vmem>>, %arg6: memref<32x128xf32, #tpu.memory_space<vmem>>, %arg7: memref<1x128xf32, #tpu.memory_space<vmem>>, %arg8: memref<8x128xf32, #tpu.memory_space<vmem>>) attributes {dimension_semantics = [#tpu.dimension_semantics<parallel>], iteration_bounds = array<i64: 1>, scalar_prefetch = 0 : i64, scratch_operands = 0 : i64, tpu.core_type = #tpu.core_type<tc>, window_params = [{transform_indices = @transform_0, window_bounds = array<i64: 8, 32>}, {pipeline_mode = #tpu.pipeline_mode<synchronous>, transform_indices = @transform_1, window_bounds = array<i64: 32, 32>}, {pipeline_mode = #tpu.pipeline_mode<synchronous>, transform_indices = @transform_2, window_bounds = array<i64: 1, 32>}, {pipeline_mode = #tpu.pipeline_mode<synchronous>, transform_indices = @transform_3, window_bounds = array<i64: 32, 32>}, {pipeline_mode = #tpu.pipeline_mode<synchronous>, transform_indices = @transform_4, window_bounds = array<i64: 1, 32>}, {pipeline_mode = #tpu.pipeline_mode<synchronous>, transform_indices = @transform_5, window_bounds = array<i64: 32, 128>}, {pipeline_mode = #tpu.pipeline_mode<synchronous>, transform_indices = @transform_6, window_bounds = array<i64: 1, 128>}, {transform_indices = @transform_7, window_bounds = array<i64: 8, 128>}]} {
    %c0 = arith.constant 0 : index
    %c0_0 = arith.constant 0 : index
    %0 = vector.load %arg1[%c0, %c0_0] : memref<8x32xf32, #tpu.memory_space<vmem>>, vector<8x32xf32>
    %c0_1 = arith.constant 0 : index
    %c0_2 = arith.constant 0 : index
    %1 = vector.load %arg2[%c0_1, %c0_2] : memref<32x32xf32, #tpu.memory_space<vmem>>, vector<32x32xf32>
    %cst = arith.constant dense<0.000000e+00> : vector<8x32xf32>
    %2 = tpu.matmul %0, %1, %cst {dimension_numbers = #tpu.dot_dimension_numbers<[1], [0], [0], [1], [0, 0, 1, 1], [], []>} : vector<8x32xf32>, vector<32x32xf32>, vector<8x32xf32> -> vector<8x32xf32>
    %c0_3 = arith.constant 0 : index
    %c0_4 = arith.constant 0 : index
    %3 = vector.load %arg3[%c0_3, %c0_4] : memref<1x32xf32, #tpu.memory_space<vmem>>, vector<1x32xf32>
    %4 = vector.broadcast %3 : vector<1x32xf32> to vector<8x32xf32>
    %5 = arith.addf %2, %4 : vector<8x32xf32>
    %cst_5 = arith.constant 0.000000e+00 : f32
    %6 = vector.broadcast %cst_5 : f32 to vector<8x32xf32>
    %7 = arith.cmpf ogt, %5, %6 : vector<8x32xf32>
    %cst_6 = arith.constant 0.00999999977 : f32
    %8 = vector.broadcast %cst_6 : f32 to vector<8x32xf32>
    %9 = arith.mulf %8, %5 : vector<8x32xf32>
    %10 = arith.select %7, %5, %9 : vector<8x32xi1>, vector<8x32xf32>
    %c0_7 = arith.constant 0 : index
    %c0_8 = arith.constant 0 : index
    %11 = vector.load %arg4[%c0_7, %c0_8] : memref<32x32xf32, #tpu.memory_space<vmem>>, vector<32x32xf32>
    %cst_9 = arith.constant dense<0.000000e+00> : vector<8x32xf32>
    %12 = tpu.matmul %10, %11, %cst_9 {dimension_numbers = #tpu.dot_dimension_numbers<[1], [0], [0], [1], [0, 0, 1, 1], [], []>} : vector<8x32xf32>, vector<32x32xf32>, vector<8x32xf32> -> vector<8x32xf32>
    %c0_10 = arith.constant 0 : index
    %c0_11 = arith.constant 0 : index
    %13 = vector.load %arg5[%c0_10, %c0_11] : memref<1x32xf32, #tpu.memory_space<vmem>>, vector<1x32xf32>
    %14 = vector.broadcast %13 : vector<1x32xf32> to vector<8x32xf32>
    %15 = arith.addf %12, %14 : vector<8x32xf32>
    %cst_12 = arith.constant 0.000000e+00 : f32
    %16 = vector.broadcast %cst_12 : f32 to vector<8x32xf32>
    %17 = arith.cmpf ogt, %15, %16 : vector<8x32xf32>
    %cst_13 = arith.constant 0.00999999977 : f32
    %18 = vector.broadcast %cst_13 : f32 to vector<8x32xf32>
    %19 = arith.mulf %18, %15 : vector<8x32xf32>
    %20 = arith.select %17, %15, %19 : vector<8x32xi1>, vector<8x32xf32>
    %c0_14 = arith.constant 0 : index
    %c0_15 = arith.constant 0 : index
    %21 = vector.load %arg6[%c0_14, %c0_15] : memref<32x128xf32, #tpu.memory_space<vmem>>, vector<32x128xf32>
    %cst_16 = arith.constant dense<0.000000e+00> : vector<8x128xf32>
    %22 = tpu.matmul %20, %21, %cst_16 {dimension_numbers = #tpu.dot_dimension_numbers<[1], [0], [0], [1], [0, 0, 1, 1], [], []>} : vector<8x32xf32>, vector<32x128xf32>, vector<8x128xf32> -> vector<8x128xf32>
    %c0_17 = arith.constant 0 : index
    %c0_18 = arith.constant 0 : index
    %23 = vector.load %arg7[%c0_17, %c0_18] : memref<1x128xf32, #tpu.memory_space<vmem>>, vector<1x128xf32>
    %24 = vector.broadcast %23 : vector<1x128xf32> to vector<8x128xf32>
    %25 = arith.addf %22, %24 : vector<8x128xf32>
    %c0_19 = arith.constant 0 : index
    %c0_20 = arith.constant 0 : index
    %26 = vector.load %arg8[%c0_19, %c0_20] : memref<8x128xf32, #tpu.memory_space<vmem>>, vector<8x128xf32>
    tpu.vector_store %arg8[%c0_19, %c0_20], %25 {strides = array<i32>} : memref<8x128xf32, #tpu.memory_space<vmem>>, vector<8x128xf32>,
    return
  }
  func.func @transform_0(%arg0: i32) -> (i32, i32) {
    %c0_i32 = arith.constant 0 : i32
    %c0_i32_0 = arith.constant 0 : i32
    return %arg0, %c0_i32 : i32, i32
  }
  func.func @transform_1(%arg0: i32) -> (i32, i32) {
    %c0_i32 = arith.constant 0 : i32
    %c0_i32_0 = arith.constant 0 : i32
    %c0_i32_1 = arith.constant 0 : i32
    return %c0_i32, %c0_i32_0 : i32, i32
  }
  func.func @transform_2(%arg0: i32) -> (i32, i32) {
    %c0_i32 = arith.constant 0 : i32
    %c0_i32_0 = arith.constant 0 : i32
    %c0_i32_1 = arith.constant 0 : i32
    return %c0_i32, %c0_i32_0 : i32, i32
  }
  func.func @transform_3(%arg0: i32) -> (i32, i32) {
    %c0_i32 = arith.constant 0 : i32
    %c0_i32_0 = arith.constant 0 : i32
    %c0_i32_1 = arith.constant 0 : i32
    return %c0_i32, %c0_i32_0 : i32, i32
  }
  func.func @transform_4(%arg0: i32) -> (i32, i32) {
    %c0_i32 = arith.constant 0 : i32
    %c0_i32_0 = arith.constant 0 : i32
    %c0_i32_1 = arith.constant 0 : i32
    return %c0_i32, %c0_i32_0 : i32, i32
  }
  func.func @transform_5(%arg0: i32) -> (i32, i32) {
    %c0_i32 = arith.constant 0 : i32
    %c0_i32_0 = arith.constant 0 : i32
    %c0_i32_1 = arith.constant 0 : i32
    return %c0_i32, %c0_i32_0 : i32, i32
  }
  func.func @transform_6(%arg0: i32) -> (i32, i32) {
    %c0_i32 = arith.constant 0 : i32
    %c0_i32_0 = arith.constant 0 : i32
    %c0_i32_1 = arith.constant 0 : i32
    return %c0_i32, %c0_i32_0 : i32, i32
  }
  func.func @transform_7(%arg0: i32) -> (i32, i32) {
    %c0_i32 = arith.constant 0 : i32
    %c0_i32_0 = arith.constant 0 : i32
    return %arg0, %c0_i32 : i32, i32
  }
}

module attributes {stable_mosaic.version = 11 : i64} {
  func.func @_mlp_kernel(%arg0: i32, %arg1: memref<8x32xf32, #tpu.memory_space<vmem>>, %arg2: memref<32x32xf32, #tpu.memory_space<vmem>>, %arg3: memref<1x32xf32, #tpu.memory_space<vmem>>, %arg4: memref<32x32xf32, #tpu.memory_space<vmem>>, %arg5: memref<1x32xf32, #tpu.memory_space<vmem>>, %arg6: memref<32x128xf32, #tpu.memory_space<vmem>>, %arg7: memref<1x128xf32, #tpu.memory_space<vmem>>, %arg8: memref<8x128xf32, #tpu.memory_space<vmem>>) attributes {dimension_semantics = [#tpu.dimension_semantics<parallel>], iteration_bounds = array<i64: 1>, scalar_prefetch = 0 : i64, scratch_operands = 0 : i64, tpu.core_type = #tpu.core_type<tc>, window_params = [{transform_indices = @transform_0, window_bounds = array<i64: 8, 32>}, {pipeline_mode = #tpu.pipeline_mode<synchronous>, transform_indices = @transform_1, window_bounds = array<i64: 32, 32>}, {pipeline_mode = #tpu.pipeline_mode<synchronous>, transform_indices = @transform_2, window_bounds = array<i64: 1, 32>}, {pipeline_mode = #tpu.pipeline_mode<synchronous>, transform_indices = @transform_3, window_bounds = array<i64: 32, 32>}, {pipeline_mode = #tpu.pipeline_mode<synchronous>, transform_indices = @transform_4, window_bounds = array<i64: 1, 32>}, {pipeline_mode = #tpu.pipeline_mode<synchronous>, transform_indices = @transform_5, window_bounds = array<i64: 32, 128>}, {pipeline_mode = #tpu.pipeline_mode<synchronous>, transform_indices = @transform_6, window_bounds = array<i64: 1, 128>}, {transform_indices = @transform_7, window_bounds = array<i64: 8, 128>}]} {
    %c0 = arith.constant 0 : index
    %c0_0 = arith.constant 0 : index
    %0 = vector.load %arg1[%c0, %c0_0] : memref<8x32xf32, #tpu.memory_space<vmem>>, vector<8x32xf32>
    %c0_1 = arith.constant 0 : index
    %c0_2 = arith.constant 0 : index
    %1 = vector.load %arg2[%c0_1, %c0_2] : memref<32x32xf32, #tpu.memory_space<vmem>>, vector<32x32xf32>
    %cst = arith.constant dense<0.000000e+00> : vector<8x32xf32>
    %2 = tpu.matmul %0, %1, %cst {dimension_numbers = #tpu.dot_dimension_numbers<[1], [0], [0], [1], [0, 0, 1, 1], [], []>} : vector<8x32xf32>, vector<32x32xf32>, vector<8x32xf32> -> vector<8x32xf32>
    %c0_3 = arith.constant 0 : index
    %c0_4 = arith.constant 0 : index
    %3 = vector.load %arg3[%c0_3, %c0_4] : memref<1x32xf32, #tpu.memory_space<vmem>>, vector<1x32xf32>
    %4 = vector.broadcast %3 : vector<1x32xf32> to vector<8x32xf32>
    %5 = arith.addf %2, %4 : vector<8x32xf32>
    %cst_5 = arith.constant 0.000000e+00 : f32
    %6 = vector.broadcast %cst_5 : f32 to vector<8x32xf32>
    %7 = arith.cmpf ogt, %5, %6 : vector<8x32xf32>
    %cst_6 = arith.constant 0.00999999977 : f32
    %8 = vector.broadcast %cst_6 : f32 to vector<8x32xf32>
    %9 = arith.mulf %8, %5 : vector<8x32xf32>
    %10 = arith.select %7, %5, %9 : vector<8x32xi1>, vector<8x32xf32>
    %c0_7 = arith.constant 0 : index
    %c0_8 = arith.constant 0 : index
    %11 = vector.load %arg4[%c0_7, %c0_8] : memref<32x32xf32, #tpu.memory_space<vmem>>, vector<32x32xf32>
    %cst_9 = arith.constant dense<0.000000e+00> : vector<8x32xf32>
    %12 = tpu.matmul %10, %11, %cst_9 {dimension_numbers = #tpu.dot_dimension_numbers<[1], [0], [0], [1], [0, 0, 1, 1], [], []>} : vector<8x32xf32>, vector<32x32xf32>, vector<8x32xf32> -> vector<8x32xf32>
    %c0_10 = arith.constant 0 : index
    %c0_11 = arith.constant 0 : index
    %13 = vector.load %arg5[%c0_10, %c0_11] : memref<1x32xf32, #tpu.memory_space<vmem>>, vector<1x32xf32>
    %14 = vector.broadcast %13 : vector<1x32xf32> to vector<8x32xf32>
    %15 = arith.addf %12, %14 : vector<8x32xf32>
    %cst_12 = arith.constant 0.000000e+00 : f32
    %16 = vector.broadcast %cst_12 : f32 to vector<8x32xf32>
    %17 = arith.cmpf ogt, %15, %16 : vector<8x32xf32>
    %cst_13 = arith.constant 0.00999999977 : f32
    %18 = vector.broadcast %cst_13 : f32 to vector<8x32xf32>
    %19 = arith.mulf %18, %15 : vector<8x32xf32>
    %20 = arith.select %17, %15, %19 : vector<8x32xi1>, vector<8x32xf32>
    %c0_14 = arith.constant 0 : index
    %c0_15 = arith.constant 0 : index
    %21 = vector.load %arg6[%c0_14, %c0_15] : memref<32x128xf32, #tpu.memory_space<vmem>>, vector<32x128xf32>
    %cst_16 = arith.constant dense<0.000000e+00> : vector<8x128xf32>
    %22 = tpu.matmul %20, %21, %cst_16 {dimension_numbers = #tpu.dot_dimension_numbers<[1], [0], [0], [1], [0, 0, 1, 1], [], []>} : vector<8x32xf32>, vector<32x128xf32>, vector<8x128xf32> -> vector<8x128xf32>
    %c0_17 = arith.constant 0 : index
    %c0_18 = arith.constant 0 : index
    %23 = vector.load %arg7[%c0_17, %c0_18] : memref<1x128xf32, #tpu.memory_space<vmem>>, vector<1x128xf32>
    %24 = vector.broadcast %23 : vector<1x128xf32> to vector<8x128xf32>
    %25 = arith.addf %22, %24 : vector<8x128xf32>
    %c0_19 = arith.constant 0 : index
    %c0_20 = arith.constant 0 : index
    %26 = vector.load %arg8[%c0_19, %c0_20] : memref<8x128xf32, #tpu.memory_space<vmem>>, vector<8x128xf32>
    tpu.vector_store %arg8[%c0_19, %c0_20], %25 {strides = array<i32>} : memref<8x128xf32, #tpu.memory_space<vmem>>, vector<8x128xf32>,
    return
  }
  func.func @transform_0(%arg0: i32) -> (i32, i32) {
    %c0_i32 = arith.constant 0 : i32
    %c0_i32_0 = arith.constant 0 : i32
    return %arg0, %c0_i32 : i32, i32
  }
  func.func @transform_1(%arg0: i32) -> (i32, i32) {
    %c0_i32 = arith.constant 0 : i32
    %c0_i32_0 = arith.constant 0 : i32
    %c0_i32_1 = arith.constant 0 : i32
    return %c0_i32, %c0_i32_0 : i32, i32
  }
  func.func @transform_2(%arg0: i32) -> (i32, i32) {
    %c0_i32 = arith.constant 0 : i32
    %c0_i32_0 = arith.constant 0 : i32
    %c0_i32_1 = arith.constant 0 : i32
    return %c0_i32, %c0_i32_0 : i32, i32
  }
  func.func @transform_3(%arg0: i32) -> (i32, i32) {
    %c0_i32 = arith.constant 0 : i32
    %c0_i32_0 = arith.constant 0 : i32
    %c0_i32_1 = arith.constant 0 : i32
    return %c0_i32, %c0_i32_0 : i32, i32
  }
  func.func @transform_4(%arg0: i32) -> (i32, i32) {
    %c0_i32 = arith.constant 0 : i32
    %c0_i32_0 = arith.constant 0 : i32
    %c0_i32_1 = arith.constant 0 : i32
    return %c0_i32, %c0_i32_0 : i32, i32
  }
  func.func @transform_5(%arg0: i32) -> (i32, i32) {
    %c0_i32 = arith.constant 0 : i32
    %c0_i32_0 = arith.constant 0 : i32
    %c0_i32_1 = arith.constant 0 : i32
    return %c0_i32, %c0_i32_0 : i32, i32
  }
  func.func @transform_6(%arg0: i32) -> (i32, i32) {
    %c0_i32 = arith.constant 0 : i32
    %c0_i32_0 = arith.constant 0 : i32
    %c0_i32_1 = arith.constant 0 : i32
    return %c0_i32, %c0_i32_0 : i32, i32
  }
  func.func @transform_7(%arg0: i32) -> (i32, i32) {
    %c0_i32 = arith.constant 0 : i32
    %c0_i32_0 = arith.constant 0 : i32
    return %arg0, %c0_i32 : i32, i32
  }
}

</mosaic_0001>

<llo_original>
// kernel: tpu_custom_call.1
$region0: #{tpu_custom_call.1}
  #allocation0 [shape = 'u32[]', space=smem, size = 0x4, offset = 0x4, fixed_abs, tag = 'smem constant byte address 0x4 - core index']
  #allocation1 [shape = 'u32[144,128]{1,0:T(1,128)}', space=vmem, size = 0x12000, scoped, tag = 'internal scratch']
  %s0 = inlined_call_operand.hbm [shape: f32[8,32], index: 0, kind: input, shape index: {}]
  %s1 = inlined_call_operand.hbm [shape: f32[32,32], index: 1, kind: input, shape index: {}]
  %s2 = inlined_call_operand.vmem [shape: f32[1,32], index: 2, kind: input, shape index: {}]
  %s3 = inlined_call_operand.hbm [shape: f32[32,32], index: 3, kind: input, shape index: {}]
  %s4 = inlined_call_operand.vmem [shape: f32[1,32], index: 4, kind: input, shape index: {}]
  %s5 = inlined_call_operand.hbm [shape: f32[32,128], index: 5, kind: input, shape index: {}]
  %s6 = inlined_call_operand.vmem [shape: f32[1,128], index: 6, kind: input, shape index: {}]
  %s7 = inlined_call_operand.hbm [shape: f32[8,128], index: 7, kind: output, shape index: {}]
  %s8 = sld [smem:[#allocation0]]
  $region54: #{tpu_custom_call.1} parent=0
    _
  %s10 = ssub.s32 1, %s8
  %s11 = scalar_select 0, %s10, %s8
  $region1: #{tpu_custom_call.1} parent=0
    #allocation2 [shape = 'u8[4096]{0}', space=vmem, size = 0x1000, scoped, tag = 'input window, operand 0, single buffered']
    #allocation3 [shape = 's32[1]{0}', space=sflag, size = 0x4, scoped, tag = 'scoped memory for tpu_custom_call.1']
    #allocation4 [shape = 's32[1]{0}', space=sflag, size = 0x4, scoped, tag = 'scoped memory for tpu_custom_call.1']
    #allocation5 [shape = 'u8[16384]{0}', space=vmem, size = 0x4000, scoped, tag = 'input window, operand 1, single buffered']
    #allocation6 [shape = 's32[1]{0}', space=sflag, size = 0x4, scoped, tag = 'scoped memory for tpu_custom_call.1']
    #allocation7 [shape = 'u8[16384]{0}', space=vmem, size = 0x4000, scoped, tag = 'input window, operand 3, single buffered']
    #allocation8 [shape = 'u8[16384]{0}', space=vmem, size = 0x4000, scoped, tag = 'input window, operand 5, single buffered']
    #allocation9 [shape = 's32[1]{0}', space=sflag, size = 0x4, scoped, tag = 'scoped memory for tpu_custom_call.1']
    #allocation10 [shape = 'u8[4096]{0}', space=vmem, size = 0x1000, scoped, tag = 'output window, operand 0, single buffered']
    %12 = vsyncpa [#allocation3], 0
    %13 = vsyncpa [#allocation6], 0
    %14 = vsyncpa [#allocation9], 0
    %15 = vsyncpa [#allocation4], 0
    // Predicated region
    $region2: #{tpu_custom_call.1} parent=1 // pred_check
      _
    $region3: #{tpu_custom_call.1} parent=1 // pred_check_branch
      %17 = sbr.rel (0) target = $region5
    $region4: #{tpu_custom_call.1} parent=1 // pred_region
      %s19 = ssub.s32 128, 128
      %20 = vsyncadd [#allocation3], %s19
      %s22 = sshll.u32 [#allocation2], 4
      %s23 = int_to_ptr.vmem [resolvable:$true] %s22
      %25 = dma.hbm_to_vmem [thread:$0]  %s0, 128, %s23, [#allocation3]
    $region5: #{tpu_custom_call.1} parent=1 // pred_fallthru
      _
    // Predicated region
    $region6: #{tpu_custom_call.1} parent=1 // pred_check
      _
    $region7: #{tpu_custom_call.1} parent=1 // pred_check_branch
      %27 = sbr.rel (0) target = $region9
    $region8: #{tpu_custom_call.1} parent=1 // pred_region
      %s29 = ssub.s32 512, 512
      %30 = vsyncadd [#allocation6], %s29
      %s31 = sshll.u32 [#allocation5], 4
      %s32 = int_to_ptr.vmem [resolvable:$true] %s31
      %37 = dma.hbm_to_vmem [thread:$0]  %s1, 512, %s32, [#allocation6], 128, 128, 8
    $region9: #{tpu_custom_call.1} parent=1 // pred_fallthru
      _
    // Predicated region
    $region10: #{tpu_custom_call.1} parent=1 // pred_check
      _
    $region11: #{tpu_custom_call.1} parent=1 // pred_check_branch
      %39 = sbr.rel (0) target = $region13
    $region12: #{tpu_custom_call.1} parent=1 // pred_region
      _
    $region13: #{tpu_custom_call.1} parent=1 // pred_fallthru
      _
    // Predicated region
    $region14: #{tpu_custom_call.1} parent=1 // pred_check
      _
    $region15: #{tpu_custom_call.1} parent=1 // pred_check_branch
      %41 = sbr.rel (0) target = $region17
    $region16: #{tpu_custom_call.1} parent=1 // pred_region
      %s43 = ssub.s32 512, 512
      %44 = vsyncadd [#allocation6], %s43
      %s45 = sshll.u32 [#allocation7], 4
      %s46 = int_to_ptr.vmem [resolvable:$true] %s45
      %51 = dma.hbm_to_vmem [thread:$0]  %s3, 512, %s46, [#allocation6], 128, 128, 8
    $region17: #{tpu_custom_call.1} parent=1 // pred_fallthru
      _
    // Predicated region
    $region18: #{tpu_custom_call.1} parent=1 // pred_check
      _
    $region19: #{tpu_custom_call.1} parent=1 // pred_check_branch
      %53 = sbr.rel (0) target = $region21
    $region20: #{tpu_custom_call.1} parent=1 // pred_region
      _
    $region21: #{tpu_custom_call.1} parent=1 // pred_fallthru
      _
    // Predicated region
    $region22: #{tpu_custom_call.1} parent=1 // pred_check
      _
    $region23: #{tpu_custom_call.1} parent=1 // pred_check_branch
      %55 = sbr.rel (0) target = $region25
    $region24: #{tpu_custom_call.1} parent=1 // pred_region
      %s57 = ssub.s32 512, 512
      %58 = vsyncadd [#allocation9], %s57
      %s59 = sshll.u32 [#allocation8], 4
      %s60 = int_to_ptr.vmem [resolvable:$true] %s59
      %65 = dma.hbm_to_vmem [thread:$0]  %s5, 512, %s60, [#allocation9], 128, 128, 8
    $region25: #{tpu_custom_call.1} parent=1 // pred_fallthru
      _
    // Predicated region
    $region26: #{tpu_custom_call.1} parent=1 // pred_check
      _
    $region27: #{tpu_custom_call.1} parent=1 // pred_check_branch
      %67 = sbr.rel (0) target = $region29
    $region28: #{tpu_custom_call.1} parent=1 // pred_region
      _
    $region29: #{tpu_custom_call.1} parent=1 // pred_fallthru
      _
    // Predicated region
    $region30: #{tpu_custom_call.1} parent=1 // pred_check
      _
    $region31: #{tpu_custom_call.1} parent=1 // pred_check_branch
      %69 = sbr.rel (0) target = $region33
    $region32: #{tpu_custom_call.1} parent=1 // pred_region
      %70 = dma.done [#allocation3], 128
    $region33: #{tpu_custom_call.1} parent=1 // pred_fallthru
      _
    // Predicated region
    $region34: #{tpu_custom_call.1} parent=1 // pred_check
      _
    $region35: #{tpu_custom_call.1} parent=1 // pred_check_branch
      %72 = sbr.rel (0) target = $region37
    $region36: #{tpu_custom_call.1} parent=1 // pred_region
      %73 = dma.done [#allocation6], 512
    $region37: #{tpu_custom_call.1} parent=1 // pred_fallthru
      _
    // Predicated region
    $region38: #{tpu_custom_call.1} parent=1 // pred_check
      _
    $region39: #{tpu_custom_call.1} parent=1 // pred_check_branch
      %75 = sbr.rel (0) target = $region41
    $region40: #{tpu_custom_call.1} parent=1 // pred_region
      %76 = dma.done [#allocation6], 512
    $region41: #{tpu_custom_call.1} parent=1 // pred_fallthru
      _
    // Predicated region
    $region42: #{tpu_custom_call.1} parent=1 // pred_check
      _
    $region43: #{tpu_custom_call.1} parent=1 // pred_check_branch
      %78 = sbr.rel (0) target = $region45
    $region44: #{tpu_custom_call.1} parent=1 // pred_region
      %79 = dma.done [#allocation9], 512
    $region45: #{tpu_custom_call.1} parent=1 // pred_fallthru
      _
    %v80 = vld [vmem:[#allocation2] sm:$0xff]
    %v81 = vld [vmem:[#allocation5] sm:$0xff]
    %v82 = vld [vmem:[#allocation5 + $0x8] sm:$0xff]
    %v83 = vld [vmem:[#allocation5 + $0x10] sm:$0xff]
    %v84 = vld [vmem:[#allocation5 + $0x18] sm:$0xff]
    %v85 = vld [vmem:[%s2] sm:$0x1]
    %v87 = vlaneseq
    %v88 = vshrl.u32 %v87, 7
    %v89 = vsub.s32 0, %v88
    %v90 = vrot.slane %v85, %v89
    %vm92 = vcmask 261120
    %v94 = vsel %vm92, %v80, 0
    %96 = vmatprep.subr.mxu0 0.0
    %97 = vmatpush1.msra.mxu0 %v81
    %98 = vmatprep.subr.mxu0 0.0
    %99 = vmatpush1.msra.mxu0 %v82
    %100 = vmatprep.subr.mxu0 0.0
    %101 = vmatpush1.msra.mxu0 %v83
    %102 = vmatprep.subr.mxu0 0.0
    %103 = vmatpush1.msra.mxu0 %v84
    %104 = vmatprep.subr.mxu0 0.0
    %105 = vmatpush1.msra.mxu0 0.0
    %106 = vmatprep.subr.mxu0 0.0
    %107 = vmatpush1.msra.mxu0 0.0
    %108 = vmatprep.subr.mxu0 0.0
    %109 = vmatpush1.msra.mxu0 0.0
    %110 = vmatprep.subr.mxu0 0.0
    %111 = vmatpush1.msra.mxu0 0.0
    %112 = vmatprep.subr.mxu0 0.0
    %113 = vmatpush1.msra.mxu0 0.0
    %114 = vmatprep.subr.mxu0 0.0
    %115 = vmatpush1.msra.mxu0 0.0
    %116 = vmatprep.subr.mxu0 0.0
    %117 = vmatpush1.msra.mxu0 0.0
    %118 = vmatprep.subr.mxu0 0.0
    %119 = vmatpush1.msra.mxu0 0.0
    %120 = vmatprep.subr.mxu0 0.0
    %121 = vmatpush1.msra.mxu0 0.0
    %122 = vmatprep.subr.mxu0 0.0
    %123 = vmatpush1.msra.mxu0 0.0
    %124 = vmatprep.subr.mxu0 0.0
    %125 = vmatpush1.msra.mxu0 0.0
    %126 = vmatprep.subr.mxu0 0.0
    %127 = vmatpush1.msra.mxu0 0.0
    %128 = vmatprep.subr.mxu0 0.0
    %129 = vmatpush1.msra.mxu0 0.0
    %130 = vmatprep.subr.mxu0 0.0
    %131 = vmatpush1.msra.mxu0 0.0
    %132 = vmatprep.subr.mxu0 0.0
    %133 = vmatpush1.msra.mxu0 0.0
    %134 = vmatprep.subr.mxu0 0.0
    %135 = vmatpush1.msra.mxu0 0.0
    %136 = vmatprep.subr.mxu0 0.0
    %137 = vmatpush1.msra.mxu0 0.0
    %138 = vmatprep.subr.mxu0 0.0
    %139 = vmatpush1.msra.mxu0 0.0
    %140 = vmatprep.subr.mxu0 0.0
    %141 = vmatpush1.msra.mxu0 0.0
    %142 = vmatprep.subr.mxu0 0.0
    %143 = vmatpush1.msra.mxu0 0.0
    %144 = vmatprep.subr.mxu0 0.0
    %145 = vmatpush1.msra.mxu0 0.0
    %146 = vmatprep.subr.mxu0 0.0
    %147 = vmatpush1.msra.mxu0 0.0
    %148 = vmatprep.subr.mxu0 0.0
    %149 = vmatpush1.msra.mxu0 0.0
    %150 = vmatprep.subr.mxu0 0.0
    %151 = vmatpush1.msra.mxu0 0.0
    %152 = vmatprep.subr.mxu0 0.0
    %153 = vmatpush1.msra.mxu0 0.0
    %154 = vmatprep.subr.mxu0 0.0
    %155 = vmatpush1.msra.mxu0 0.0
    %156 = vmatprep.subr.mxu0 0.0
    %157 = vmatpush1.msra.mxu0 0.0
    %158 = vmatprep.subr.mxu0 0.0
    %159 = vmatpush1.msra.mxu0 0.0
    %160 = vmatprep.mubr.f32.mxu0 0.0
    %161 = vmatmul.mubr.f32.gmra.mrb[0].mxu0 %v94
    %v162 = vpop.f32.mrb[0].mxu0
    %v163 = vadd.f32 %v90, %v162
    %v164 = vpop.f32.mrb[0].mxu0
    %165 = vdwg.mxu0
    %vm166 = vcmp.gt.f32.partialorder %v163, 0.0
    %v167 = vmul.f32 %v163, 0.01
    %v168 = vsel %vm166, %v163, %v167
    %v169 = vld [vmem:[#allocation7] sm:$0xff]
    %v170 = vld [vmem:[#allocation7 + $0x8] sm:$0xff]
    %v171 = vld [vmem:[#allocation7 + $0x10] sm:$0xff]
    %v172 = vld [vmem:[#allocation7 + $0x18] sm:$0xff]
    %v173 = vld [vmem:[%s4] sm:$0x1]
    %v175 = vlaneseq
    %v176 = vshrl.u32 %v175, 7
    %v177 = vsub.s32 0, %v176
    %v178 = vrot.slane %v173, %v177
    %v181 = vsel %vm92, %v168, 0
    %183 = vmatprep.subr.mxu0 0.0
    %184 = vmatpush1.msra.mxu0 %v169
    %185 = vmatprep.subr.mxu0 0.0
    %186 = vmatpush1.msra.mxu0 %v170
    %187 = vmatprep.subr.mxu0 0.0
    %188 = vmatpush1.msra.mxu0 %v171
    %189 = vmatprep.subr.mxu0 0.0
    %190 = vmatpush1.msra.mxu0 %v172
    %191 = vmatprep.subr.mxu0 0.0
    %192 = vmatpush1.msra.mxu0 0.0
    %193 = vmatprep.subr.mxu0 0.0
    %194 = vmatpush1.msra.mxu0 0.0
    %195 = vmatprep.subr.mxu0 0.0
    %196 = vmatpush1.msra.mxu0 0.0
    %197 = vmatprep.subr.mxu0 0.0
    %198 = vmatpush1.msra.mxu0 0.0
    %199 = vmatprep.subr.mxu0 0.0
    %200 = vmatpush1.msra.mxu0 0.0
    %201 = vmatprep.subr.mxu0 0.0
    %202 = vmatpush1.msra.mxu0 0.0
    %203 = vmatprep.subr.mxu0 0.0
    %204 = vmatpush1.msra.mxu0 0.0
    %205 = vmatprep.subr.mxu0 0.0
    %206 = vmatpush1.msra.mxu0 0.0
    %207 = vmatprep.subr.mxu0 0.0
    %208 = vmatpush1.msra.mxu0 0.0
    %209 = vmatprep.subr.mxu0 0.0
    %210 = vmatpush1.msra.mxu0 0.0
    %211 = vmatprep.subr.mxu0 0.0
    %212 = vmatpush1.msra.mxu0 0.0
    %213 = vmatprep.subr.mxu0 0.0
    %214 = vmatpush1.msra.mxu0 0.0
    %215 = vmatprep.subr.mxu0 0.0
    %216 = vmatpush1.msra.mxu0 0.0
    %217 = vmatprep.subr.mxu0 0.0
    %218 = vmatpush1.msra.mxu0 0.0
    %219 = vmatprep.subr.mxu0 0.0
    %220 = vmatpush1.msra.mxu0 0.0
    %221 = vmatprep.subr.mxu0 0.0
    %222 = vmatpush1.msra.mxu0 0.0
    %223 = vmatprep.subr.mxu0 0.0
    %224 = vmatpush1.msra.mxu0 0.0
    %225 = vmatprep.subr.mxu0 0.0
    %226 = vmatpush1.msra.mxu0 0.0
    %227 = vmatprep.subr.mxu0 0.0
    %228 = vmatpush1.msra.mxu0 0.0
    %229 = vmatprep.subr.mxu0 0.0
    %230 = vmatpush1.msra.mxu0 0.0
    %231 = vmatprep.subr.mxu0 0.0
    %232 = vmatpush1.msra.mxu0 0.0
    %233 = vmatprep.subr.mxu0 0.0
    %234 = vmatpush1.msra.mxu0 0.0
    %235 = vmatprep.subr.mxu0 0.0
    %236 = vmatpush1.msra.mxu0 0.0
    %237 = vmatprep.subr.mxu0 0.0
    %238 = vmatpush1.msra.mxu0 0.0
    %239 = vmatprep.subr.mxu0 0.0
    %240 = vmatpush1.msra.mxu0 0.0
    %241 = vmatprep.subr.mxu0 0.0
    %242 = vmatpush1.msra.mxu0 0.0
    %243 = vmatprep.subr.mxu0 0.0
    %244 = vmatpush1.msra.mxu0 0.0
    %245 = vmatprep.subr.mxu0 0.0
    %246 = vmatpush1.msra.mxu0 0.0
    %247 = vmatprep.mubr.f32.mxu0 0.0
    %248 = vmatmul.mubr.f32.gmra.mrb[0].mxu0 %v181
    %v249 = vpop.f32.mrb[0].mxu0
    %v250 = vadd.f32 %v178, %v249
    %v251 = vpop.f32.mrb[0].mxu0
    %252 = vdwg.mxu0
    %vm253 = vcmp.gt.f32.partialorder %v250, 0.0
    %v254 = vmul.f32 %v250, 0.01
    %v255 = vsel %vm253, %v250, %v254
    %v256 = vld [vmem:[#allocation8] sm:$0xff]
    %v257 = vld [vmem:[#allocation8 + $0x8] sm:$0xff]
    %v258 = vld [vmem:[#allocation8 + $0x10] sm:$0xff]
    %v259 = vld [vmem:[#allocation8 + $0x18] sm:$0xff]
    %v260 = vld [vmem:[%s6] sm:$0x1]
    %v262 = vlaneseq
    %v263 = vshrl.u32 %v262, 7
    %v264 = vsub.s32 0, %v263
    %v265 = vrot.slane %v260, %v264
    %v268 = vsel %vm92, %v255, 0
    %270 = vmatprep.subr.mxu0 0.0
    %271 = vmatpush1.msra.mxu0 %v256
    %272 = vmatprep.subr.mxu0 0.0
    %273 = vmatpush1.msra.mxu0 %v257
    %274 = vmatprep.subr.mxu0 0.0
    %275 = vmatpush1.msra.mxu0 %v258
    %276 = vmatprep.subr.mxu0 0.0
    %277 = vmatpush1.msra.mxu0 %v259
    %278 = vmatprep.subr.mxu0 0.0
    %279 = vmatpush1.msra.mxu0 0.0
    %280 = vmatprep.subr.mxu0 0.0
    %281 = vmatpush1.msra.mxu0 0.0
    %282 = vmatprep.subr.mxu0 0.0
    %283 = vmatpush1.msra.mxu0 0.0
    %284 = vmatprep.subr.mxu0 0.0
    %285 = vmatpush1.msra.mxu0 0.0
    %286 = vmatprep.subr.mxu0 0.0
    %287 = vmatpush1.msra.mxu0 0.0
    %288 = vmatprep.subr.mxu0 0.0
    %289 = vmatpush1.msra.mxu0 0.0
    %290 = vmatprep.subr.mxu0 0.0
    %291 = vmatpush1.msra.mxu0 0.0
    %292 = vmatprep.subr.mxu0 0.0
    %293 = vmatpush1.msra.mxu0 0.0
    %294 = vmatprep.subr.mxu0 0.0
    %295 = vmatpush1.msra.mxu0 0.0
    %296 = vmatprep.subr.mxu0 0.0
    %297 = vmatpush1.msra.mxu0 0.0
    %298 = vmatprep.subr.mxu0 0.0
    %299 = vmatpush1.msra.mxu0 0.0
    %300 = vmatprep.subr.mxu0 0.0
    %301 = vmatpush1.msra.mxu0 0.0
    %302 = vmatprep.subr.mxu0 0.0
    %303 = vmatpush1.msra.mxu0 0.0
    %304 = vmatprep.subr.mxu0 0.0
    %305 = vmatpush1.msra.mxu0 0.0
    %306 = vmatprep.subr.mxu0 0.0
    %307 = vmatpush1.msra.mxu0 0.0
    %308 = vmatprep.subr.mxu0 0.0
    %309 = vmatpush1.msra.mxu0 0.0
    %310 = vmatprep.subr.mxu0 0.0
    %311 = vmatpush1.msra.mxu0 0.0
    %312 = vmatprep.subr.mxu0 0.0
    %313 = vmatpush1.msra.mxu0 0.0
    %314 = vmatprep.subr.mxu0 0.0
    %315 = vmatpush1.msra.mxu0 0.0
    %316 = vmatprep.subr.mxu0 0.0
    %317 = vmatpush1.msra.mxu0 0.0
    %318 = vmatprep.subr.mxu0 0.0
    %319 = vmatpush1.msra.mxu0 0.0
    %320 = vmatprep.subr.mxu0 0.0
    %321 = vmatpush1.msra.mxu0 0.0
    %322 = vmatprep.subr.mxu0 0.0
    %323 = vmatpush1.msra.mxu0 0.0
    %324 = vmatprep.subr.mxu0 0.0
    %325 = vmatpush1.msra.mxu0 0.0
    %326 = vmatprep.subr.mxu0 0.0
    %327 = vmatpush1.msra.mxu0 0.0
    %328 = vmatprep.subr.mxu0 0.0
    %329 = vmatpush1.msra.mxu0 0.0
    %330 = vmatprep.subr.mxu0 0.0
    %331 = vmatpush1.msra.mxu0 0.0
    %332 = vmatprep.subr.mxu0 0.0
    %333 = vmatpush1.msra.mxu0 0.0
    %334 = vmatprep.mubr.f32.mxu0 0.0
    %335 = vmatmul.mubr.f32.gmra.mrb[0].mxu0 %v268
    %v336 = vpop.f32.mrb[0].mxu0
    %v337 = vadd.f32 %v265, %v336
    %v338 = vpop.f32.mrb[0].mxu0
    %339 = vdwg.mxu0
    %340 = vst [vmem:[#allocation10] sm:$0xff] %v337
    // Predicated region
    $region46: #{tpu_custom_call.1} parent=1 // pred_check
      _
    $region47: #{tpu_custom_call.1} parent=1 // pred_check_branch
      %342 = sbr.rel (0) target = $region49
    $region48: #{tpu_custom_call.1} parent=1 // pred_region
      %s344 = ssub.s32 128, 128
      %345 = vsyncadd [#allocation4], %s344
      %s347 = sshll.u32 [#allocation10], 4
      %s348 = int_to_ptr.vmem [resolvable:$true] %s347
      %350 = dma.vmem_to_hbm [thread:$0]  %s348, 128, %s7, [#allocation4]
    $region49: #{tpu_custom_call.1} parent=1 // pred_fallthru
      _
    // Predicated region
    $region50: #{tpu_custom_call.1} parent=1 // pred_check
      _
    $region51: #{tpu_custom_call.1} parent=1 // pred_check_branch
      %352 = sbr.rel (0) target = $region53
    $region52: #{tpu_custom_call.1} parent=1 // pred_region
      %353 = dma.done [#allocation4], 128
    $region53: #{tpu_custom_call.1} parent=1 // pred_fallthru
      _
    %354 = vsyncpa [#allocation3], 1
    %355 = vsyncpa [#allocation6], 1
    %356 = vsyncpa [#allocation9], 1
    %357 = vsyncpa [#allocation4], 1

// kernel: tpu_custom_call.1
$region0: #{tpu_custom_call.1}
  #allocation0 [shape = 'u32[]', space=smem, size = 0x4, offset = 0x4, fixed_abs, tag = 'smem constant byte address 0x4 - core index']
  #allocation1 [shape = 'u32[144,128]{1,0:T(1,128)}', space=vmem, size = 0x12000, scoped, tag = 'internal scratch']
  %s0 = inlined_call_operand.hbm [shape: f32[8,32], index: 0, kind: input, shape index: {}]
  %s1 = inlined_call_operand.hbm [shape: f32[32,32], index: 1, kind: input, shape index: {}]
  %s2 = inlined_call_operand.vmem [shape: f32[1,32], index: 2, kind: input, shape index: {}]
  %s3 = inlined_call_operand.hbm [shape: f32[32,32], index: 3, kind: input, shape index: {}]
  %s4 = inlined_call_operand.vmem [shape: f32[1,32], index: 4, kind: input, shape index: {}]
  %s5 = inlined_call_operand.hbm [shape: f32[32,128], index: 5, kind: input, shape index: {}]
  %s6 = inlined_call_operand.vmem [shape: f32[1,128], index: 6, kind: input, shape index: {}]
  %s7 = inlined_call_operand.hbm [shape: f32[8,128], index: 7, kind: output, shape index: {}]
  %s8 = sld [smem:[#allocation0]]
  $region54: #{tpu_custom_call.1} parent=0
    _
  %s10 = ssub.s32 1, %s8
  %s11 = scalar_select 0, %s10, %s8
  $region1: #{tpu_custom_call.1} parent=0
    #allocation2 [shape = 'u8[4096]{0}', space=vmem, size = 0x1000, scoped, tag = 'input window, operand 0, single buffered']
    #allocation3 [shape = 's32[1]{0}', space=sflag, size = 0x4, scoped, tag = 'scoped memory for tpu_custom_call.1']
    #allocation4 [shape = 's32[1]{0}', space=sflag, size = 0x4, scoped, tag = 'scoped memory for tpu_custom_call.1']
    #allocation5 [shape = 'u8[16384]{0}', space=vmem, size = 0x4000, scoped, tag = 'input window, operand 1, single buffered']
    #allocation6 [shape = 's32[1]{0}', space=sflag, size = 0x4, scoped, tag = 'scoped memory for tpu_custom_call.1']
    #allocation7 [shape = 'u8[16384]{0}', space=vmem, size = 0x4000, scoped, tag = 'input window, operand 3, single buffered']
    #allocation8 [shape = 'u8[16384]{0}', space=vmem, size = 0x4000, scoped, tag = 'input window, operand 5, single buffered']
    #allocation9 [shape = 's32[1]{0}', space=sflag, size = 0x4, scoped, tag = 'scoped memory for tpu_custom_call.1']
    #allocation10 [shape = 'u8[4096]{0}', space=vmem, size = 0x1000, scoped, tag = 'output window, operand 0, single buffered']
    %12 = vsyncpa [#allocation3], 0
    %13 = vsyncpa [#allocation6], 0
    %14 = vsyncpa [#allocation9], 0
    %15 = vsyncpa [#allocation4], 0
    // Predicated region
    $region2: #{tpu_custom_call.1} parent=1 // pred_check
      _
    $region3: #{tpu_custom_call.1} parent=1 // pred_check_branch
      %17 = sbr.rel (0) target = $region5
    $region4: #{tpu_custom_call.1} parent=1 // pred_region
      %s19 = ssub.s32 128, 128
      %20 = vsyncadd [#allocation3], %s19
      %s22 = sshll.u32 [#allocation2], 4
      %s23 = int_to_ptr.vmem [resolvable:$true] %s22
      %25 = dma.hbm_to_vmem [thread:$0]  %s0, 128, %s23, [#allocation3]
    $region5: #{tpu_custom_call.1} parent=1 // pred_fallthru
      _
    // Predicated region
    $region6: #{tpu_custom_call.1} parent=1 // pred_check
      _
    $region7: #{tpu_custom_call.1} parent=1 // pred_check_branch
      %27 = sbr.rel (0) target = $region9
    $region8: #{tpu_custom_call.1} parent=1 // pred_region
      %s29 = ssub.s32 512, 512
      %30 = vsyncadd [#allocation6], %s29
      %s31 = sshll.u32 [#allocation5], 4
      %s32 = int_to_ptr.vmem [resolvable:$true] %s31
      %37 = dma.hbm_to_vmem [thread:$0]  %s1, 512, %s32, [#allocation6], 128, 128, 8
    $region9: #{tpu_custom_call.1} parent=1 // pred_fallthru
      _
    // Predicated region
    $region10: #{tpu_custom_call.1} parent=1 // pred_check
      _
    $region11: #{tpu_custom_call.1} parent=1 // pred_check_branch
      %39 = sbr.rel (0) target = $region13
    $region12: #{tpu_custom_call.1} parent=1 // pred_region
      _
    $region13: #{tpu_custom_call.1} parent=1 // pred_fallthru
      _
    // Predicated region
    $region14: #{tpu_custom_call.1} parent=1 // pred_check
      _
    $region15: #{tpu_custom_call.1} parent=1 // pred_check_branch
      %41 = sbr.rel (0) target = $region17
    $region16: #{tpu_custom_call.1} parent=1 // pred_region
      %s43 = ssub.s32 512, 512
      %44 = vsyncadd [#allocation6], %s43
      %s45 = sshll.u32 [#allocation7], 4
      %s46 = int_to_ptr.vmem [resolvable:$true] %s45
      %51 = dma.hbm_to_vmem [thread:$0]  %s3, 512, %s46, [#allocation6], 128, 128, 8
    $region17: #{tpu_custom_call.1} parent=1 // pred_fallthru
      _
    // Predicated region
    $region18: #{tpu_custom_call.1} parent=1 // pred_check
      _
    $region19: #{tpu_custom_call.1} parent=1 // pred_check_branch
      %53 = sbr.rel (0) target = $region21
    $region20: #{tpu_custom_call.1} parent=1 // pred_region
      _
    $region21: #{tpu_custom_call.1} parent=1 // pred_fallthru
      _
    // Predicated region
    $region22: #{tpu_custom_call.1} parent=1 // pred_check
      _
    $region23: #{tpu_custom_call.1} parent=1 // pred_check_branch
      %55 = sbr.rel (0) target = $region25
    $region24: #{tpu_custom_call.1} parent=1 // pred_region
      %s57 = ssub.s32 512, 512
      %58 = vsyncadd [#allocation9], %s57
      %s59 = sshll.u32 [#allocation8], 4
      %s60 = int_to_ptr.vmem [resolvable:$true] %s59
      %65 = dma.hbm_to_vmem [thread:$0]  %s5, 512, %s60, [#allocation9], 128, 128, 8
    $region25: #{tpu_custom_call.1} parent=1 // pred_fallthru
      _
    // Predicated region
    $region26: #{tpu_custom_call.1} parent=1 // pred_check
      _
    $region27: #{tpu_custom_call.1} parent=1 // pred_check_branch
      %67 = sbr.rel (0) target = $region29
    $region28: #{tpu_custom_call.1} parent=1 // pred_region
      _
    $region29: #{tpu_custom_call.1} parent=1 // pred_fallthru
      _
    // Predicated region
    $region30: #{tpu_custom_call.1} parent=1 // pred_check
      _
    $region31: #{tpu_custom_call.1} parent=1 // pred_check_branch
      %69 = sbr.rel (0) target = $region33
    $region32: #{tpu_custom_call.1} parent=1 // pred_region
      %70 = dma.done [#allocation3], 128
    $region33: #{tpu_custom_call.1} parent=1 // pred_fallthru
      _
    // Predicated region
    $region34: #{tpu_custom_call.1} parent=1 // pred_check
      _
    $region35: #{tpu_custom_call.1} parent=1 // pred_check_branch
      %72 = sbr.rel (0) target = $region37
    $region36: #{tpu_custom_call.1} parent=1 // pred_region
      %73 = dma.done [#allocation6], 512
    $region37: #{tpu_custom_call.1} parent=1 // pred_fallthru
      _
    // Predicated region
    $region38: #{tpu_custom_call.1} parent=1 // pred_check
      _
    $region39: #{tpu_custom_call.1} parent=1 // pred_check_branch
      %75 = sbr.rel (0) target = $region41
    $region40: #{tpu_custom_call.1} parent=1 // pred_region
      %76 = dma.done [#allocation6], 512
    $region41: #{tpu_custom_call.1} parent=1 // pred_fallthru
      _
    // Predicated region
    $region42: #{tpu_custom_call.1} parent=1 // pred_check
      _
    $region43: #{tpu_custom_call.1} parent=1 // pred_check_branch
      %78 = sbr.rel (0) target = $region45
    $region44: #{tpu_custom_call.1} parent=1 // pred_region
      %79 = dma.done [#allocation9], 512
    $region45: #{tpu_custom_call.1} parent=1 // pred_fallthru
      _
    %v80 = vld [vmem:[#allocation2] sm:$0xff]
    %v81 = vld [vmem:[#allocation5] sm:$0xff]
    %v82 = vld [vmem:[#allocation5 + $0x8] sm:$0xff]
    %v83 = vld [vmem:[#allocation5 + $0x10] sm:$0xff]
    %v84 = vld [vmem:[#allocation5 + $0x18] sm:$0xff]
    %v85 = vld [vmem:[%s2] sm:$0x1]
    %v87 = vlaneseq
    %v88 = vshrl.u32 %v87, 7
    %v89 = vsub.s32 0, %v88
    %v90 = vrot.slane %v85, %v89
    %vm92 = vcmask 261120
    %v94 = vsel %vm92, %v80, 0
    %96 = vmatprep.subr.mxu0 0.0
    %97 = vmatpush1.msra.mxu0 %v81
    %98 = vmatprep.subr.mxu0 0.0
    %99 = vmatpush1.msra.mxu0 %v82
    %100 = vmatprep.subr.mxu0 0.0
    %101 = vmatpush1.msra.mxu0 %v83
    %102 = vmatprep.subr.mxu0 0.0
    %103 = vmatpush1.msra.mxu0 %v84
    %104 = vmatprep.subr.mxu0 0.0
    %105 = vmatpush1.msra.mxu0 0.0
    %106 = vmatprep.subr.mxu0 0.0
    %107 = vmatpush1.msra.mxu0 0.0
    %108 = vmatprep.subr.mxu0 0.0
    %109 = vmatpush1.msra.mxu0 0.0
    %110 = vmatprep.subr.mxu0 0.0
    %111 = vmatpush1.msra.mxu0 0.0
    %112 = vmatprep.subr.mxu0 0.0
    %113 = vmatpush1.msra.mxu0 0.0
    %114 = vmatprep.subr.mxu0 0.0
    %115 = vmatpush1.msra.mxu0 0.0
    %116 = vmatprep.subr.mxu0 0.0
    %117 = vmatpush1.msra.mxu0 0.0
    %118 = vmatprep.subr.mxu0 0.0
    %119 = vmatpush1.msra.mxu0 0.0
    %120 = vmatprep.subr.mxu0 0.0
    %121 = vmatpush1.msra.mxu0 0.0
    %122 = vmatprep.subr.mxu0 0.0
    %123 = vmatpush1.msra.mxu0 0.0
    %124 = vmatprep.subr.mxu0 0.0
    %125 = vmatpush1.msra.mxu0 0.0
    %126 = vmatprep.subr.mxu0 0.0
    %127 = vmatpush1.msra.mxu0 0.0
    %128 = vmatprep.subr.mxu0 0.0
    %129 = vmatpush1.msra.mxu0 0.0
    %130 = vmatprep.subr.mxu0 0.0
    %131 = vmatpush1.msra.mxu0 0.0
    %132 = vmatprep.subr.mxu0 0.0
    %133 = vmatpush1.msra.mxu0 0.0
    %134 = vmatprep.subr.mxu0 0.0
    %135 = vmatpush1.msra.mxu0 0.0
    %136 = vmatprep.subr.mxu0 0.0
    %137 = vmatpush1.msra.mxu0 0.0
    %138 = vmatprep.subr.mxu0 0.0
    %139 = vmatpush1.msra.mxu0 0.0
    %140 = vmatprep.subr.mxu0 0.0
    %141 = vmatpush1.msra.mxu0 0.0
    %142 = vmatprep.subr.mxu0 0.0
    %143 = vmatpush1.msra.mxu0 0.0
    %144 = vmatprep.subr.mxu0 0.0
    %145 = vmatpush1.msra.mxu0 0.0
    %146 = vmatprep.subr.mxu0 0.0
    %147 = vmatpush1.msra.mxu0 0.0
    %148 = vmatprep.subr.mxu0 0.0
    %149 = vmatpush1.msra.mxu0 0.0
    %150 = vmatprep.subr.mxu0 0.0
    %151 = vmatpush1.msra.mxu0 0.0
    %152 = vmatprep.subr.mxu0 0.0
    %153 = vmatpush1.msra.mxu0 0.0
    %154 = vmatprep.subr.mxu0 0.0
    %155 = vmatpush1.msra.mxu0 0.0
    %156 = vmatprep.subr.mxu0 0.0
    %157 = vmatpush1.msra.mxu0 0.0
    %158 = vmatprep.subr.mxu0 0.0
    %159 = vmatpush1.msra.mxu0 0.0
    %160 = vmatprep.mubr.f32.mxu0 0.0
    %161 = vmatmul.mubr.f32.gmra.mrb[0].mxu0 %v94
    %v162 = vpop.f32.mrb[0].mxu0
    %v163 = vadd.f32 %v90, %v162
    %v164 = vpop.f32.mrb[0].mxu0
    %165 = vdwg.mxu0
    %vm166 = vcmp.gt.f32.partialorder %v163, 0.0
    %v167 = vmul.f32 %v163, 0.01
    %v168 = vsel %vm166, %v163, %v167
    %v169 = vld [vmem:[#allocation7] sm:$0xff]
    %v170 = vld [vmem:[#allocation7 + $0x8] sm:$0xff]
    %v171 = vld [vmem:[#allocation7 + $0x10] sm:$0xff]
    %v172 = vld [vmem:[#allocation7 + $0x18] sm:$0xff]
    %v173 = vld [vmem:[%s4] sm:$0x1]
    %v175 = vlaneseq
    %v176 = vshrl.u32 %v175, 7
    %v177 = vsub.s32 0, %v176
    %v178 = vrot.slane %v173, %v177
    %v181 = vsel %vm92, %v168, 0
    %183 = vmatprep.subr.mxu0 0.0
    %184 = vmatpush1.msra.mxu0 %v169
    %185 = vmatprep.subr.mxu0 0.0
    %186 = vmatpush1.msra.mxu0 %v170
    %187 = vmatprep.subr.mxu0 0.0
    %188 = vmatpush1.msra.mxu0 %v171
    %189 = vmatprep.subr.mxu0 0.0
    %190 = vmatpush1.msra.mxu0 %v172
    %191 = vmatprep.subr.mxu0 0.0
    %192 = vmatpush1.msra.mxu0 0.0
    %193 = vmatprep.subr.mxu0 0.0
    %194 = vmatpush1.msra.mxu0 0.0
    %195 = vmatprep.subr.mxu0 0.0
    %196 = vmatpush1.msra.mxu0 0.0
    %197 = vmatprep.subr.mxu0 0.0
    %198 = vmatpush1.msra.mxu0 0.0
    %199 = vmatprep.subr.mxu0 0.0
    %200 = vmatpush1.msra.mxu0 0.0
    %201 = vmatprep.subr.mxu0 0.0
    %202 = vmatpush1.msra.mxu0 0.0
    %203 = vmatprep.subr.mxu0 0.0
    %204 = vmatpush1.msra.mxu0 0.0
    %205 = vmatprep.subr.mxu0 0.0
    %206 = vmatpush1.msra.mxu0 0.0
    %207 = vmatprep.subr.mxu0 0.0
    %208 = vmatpush1.msra.mxu0 0.0
    %209 = vmatprep.subr.mxu0 0.0
    %210 = vmatpush1.msra.mxu0 0.0
    %211 = vmatprep.subr.mxu0 0.0
    %212 = vmatpush1.msra.mxu0 0.0
    %213 = vmatprep.subr.mxu0 0.0
    %214 = vmatpush1.msra.mxu0 0.0
    %215 = vmatprep.subr.mxu0 0.0
    %216 = vmatpush1.msra.mxu0 0.0
    %217 = vmatprep.subr.mxu0 0.0
    %218 = vmatpush1.msra.mxu0 0.0
    %219 = vmatprep.subr.mxu0 0.0
    %220 = vmatpush1.msra.mxu0 0.0
    %221 = vmatprep.subr.mxu0 0.0
    %222 = vmatpush1.msra.mxu0 0.0
    %223 = vmatprep.subr.mxu0 0.0
    %224 = vmatpush1.msra.mxu0 0.0
    %225 = vmatprep.subr.mxu0 0.0
    %226 = vmatpush1.msra.mxu0 0.0
    %227 = vmatprep.subr.mxu0 0.0
    %228 = vmatpush1.msra.mxu0 0.0
    %229 = vmatprep.subr.mxu0 0.0
    %230 = vmatpush1.msra.mxu0 0.0
    %231 = vmatprep.subr.mxu0 0.0
    %232 = vmatpush1.msra.mxu0 0.0
    %233 = vmatprep.subr.mxu0 0.0
    %234 = vmatpush1.msra.mxu0 0.0
    %235 = vmatprep.subr.mxu0 0.0
    %236 = vmatpush1.msra.mxu0 0.0
    %237 = vmatprep.subr.mxu0 0.0
    %238 = vmatpush1.msra.mxu0 0.0
    %239 = vmatprep.subr.mxu0 0.0
    %240 = vmatpush1.msra.mxu0 0.0
    %241 = vmatprep.subr.mxu0 0.0
    %242 = vmatpush1.msra.mxu0 0.0
    %243 = vmatprep.subr.mxu0 0.0
    %244 = vmatpush1.msra.mxu0 0.0
    %245 = vmatprep.subr.mxu0 0.0
    %246 = vmatpush1.msra.mxu0 0.0
    %247 = vmatprep.mubr.f32.mxu0 0.0
    %248 = vmatmul.mubr.f32.gmra.mrb[0].mxu0 %v181
    %v249 = vpop.f32.mrb[0].mxu0
    %v250 = vadd.f32 %v178, %v249
    %v251 = vpop.f32.mrb[0].mxu0
    %252 = vdwg.mxu0
    %vm253 = vcmp.gt.f32.partialorder %v250, 0.0
    %v254 = vmul.f32 %v250, 0.01
    %v255 = vsel %vm253, %v250, %v254
    %v256 = vld [vmem:[#allocation8] sm:$0xff]
    %v257 = vld [vmem:[#allocation8 + $0x8] sm:$0xff]
    %v258 = vld [vmem:[#allocation8 + $0x10] sm:$0xff]
    %v259 = vld [vmem:[#allocation8 + $0x18] sm:$0xff]
    %v260 = vld [vmem:[%s6] sm:$0x1]
    %v262 = vlaneseq
    %v263 = vshrl.u32 %v262, 7
    %v264 = vsub.s32 0, %v263
    %v265 = vrot.slane %v260, %v264
    %v268 = vsel %vm92, %v255, 0
    %270 = vmatprep.subr.mxu0 0.0
    %271 = vmatpush1.msra.mxu0 %v256
    %272 = vmatprep.subr.mxu0 0.0
    %273 = vmatpush1.msra.mxu0 %v257
    %274 = vmatprep.subr.mxu0 0.0
    %275 = vmatpush1.msra.mxu0 %v258
    %276 = vmatprep.subr.mxu0 0.0
    %277 = vmatpush1.msra.mxu0 %v259
    %278 = vmatprep.subr.mxu0 0.0
    %279 = vmatpush1.msra.mxu0 0.0
    %280 = vmatprep.subr.mxu0 0.0
    %281 = vmatpush1.msra.mxu0 0.0
    %282 = vmatprep.subr.mxu0 0.0
    %283 = vmatpush1.msra.mxu0 0.0
    %284 = vmatprep.subr.mxu0 0.0
    %285 = vmatpush1.msra.mxu0 0.0
    %286 = vmatprep.subr.mxu0 0.0
    %287 = vmatpush1.msra.mxu0 0.0
    %288 = vmatprep.subr.mxu0 0.0
    %289 = vmatpush1.msra.mxu0 0.0
    %290 = vmatprep.subr.mxu0 0.0
    %291 = vmatpush1.msra.mxu0 0.0
    %292 = vmatprep.subr.mxu0 0.0
    %293 = vmatpush1.msra.mxu0 0.0
    %294 = vmatprep.subr.mxu0 0.0
    %295 = vmatpush1.msra.mxu0 0.0
    %296 = vmatprep.subr.mxu0 0.0
    %297 = vmatpush1.msra.mxu0 0.0
    %298 = vmatprep.subr.mxu0 0.0
    %299 = vmatpush1.msra.mxu0 0.0
    %300 = vmatprep.subr.mxu0 0.0
    %301 = vmatpush1.msra.mxu0 0.0
    %302 = vmatprep.subr.mxu0 0.0
    %303 = vmatpush1.msra.mxu0 0.0
    %304 = vmatprep.subr.mxu0 0.0
    %305 = vmatpush1.msra.mxu0 0.0
    %306 = vmatprep.subr.mxu0 0.0
    %307 = vmatpush1.msra.mxu0 0.0
    %308 = vmatprep.subr.mxu0 0.0
    %309 = vmatpush1.msra.mxu0 0.0
    %310 = vmatprep.subr.mxu0 0.0
    %311 = vmatpush1.msra.mxu0 0.0
    %312 = vmatprep.subr.mxu0 0.0
    %313 = vmatpush1.msra.mxu0 0.0
    %314 = vmatprep.subr.mxu0 0.0
    %315 = vmatpush1.msra.mxu0 0.0
    %316 = vmatprep.subr.mxu0 0.0
    %317 = vmatpush1.msra.mxu0 0.0
    %318 = vmatprep.subr.mxu0 0.0
    %319 = vmatpush1.msra.mxu0 0.0
    %320 = vmatprep.subr.mxu0 0.0
    %321 = vmatpush1.msra.mxu0 0.0
    %322 = vmatprep.subr.mxu0 0.0
    %323 = vmatpush1.msra.mxu0 0.0
    %324 = vmatprep.subr.mxu0 0.0
    %325 = vmatpush1.msra.mxu0 0.0
    %326 = vmatprep.subr.mxu0 0.0
    %327 = vmatpush1.msra.mxu0 0.0
    %328 = vmatprep.subr.mxu0 0.0
    %329 = vmatpush1.msra.mxu0 0.0
    %330 = vmatprep.subr.mxu0 0.0
    %331 = vmatpush1.msra.mxu0 0.0
    %332 = vmatprep.subr.mxu0 0.0
    %333 = vmatpush1.msra.mxu0 0.0
    %334 = vmatprep.mubr.f32.mxu0 0.0
    %335 = vmatmul.mubr.f32.gmra.mrb[0].mxu0 %v268
    %v336 = vpop.f32.mrb[0].mxu0
    %v337 = vadd.f32 %v265, %v336
    %v338 = vpop.f32.mrb[0].mxu0
    %339 = vdwg.mxu0
    %340 = vst [vmem:[#allocation10] sm:$0xff] %v337
    // Predicated region
    $region46: #{tpu_custom_call.1} parent=1 // pred_check
      _
    $region47: #{tpu_custom_call.1} parent=1 // pred_check_branch
      %342 = sbr.rel (0) target = $region49
    $region48: #{tpu_custom_call.1} parent=1 // pred_region
      %s344 = ssub.s32 128, 128
      %345 = vsyncadd [#allocation4], %s344
      %s347 = sshll.u32 [#allocation10], 4
      %s348 = int_to_ptr.vmem [resolvable:$true] %s347
      %350 = dma.vmem_to_hbm [thread:$0]  %s348, 128, %s7, [#allocation4]
    $region49: #{tpu_custom_call.1} parent=1 // pred_fallthru
      _
    // Predicated region
    $region50: #{tpu_custom_call.1} parent=1 // pred_check
      _
    $region51: #{tpu_custom_call.1} parent=1 // pred_check_branch
      %352 = sbr.rel (0) target = $region53
    $region52: #{tpu_custom_call.1} parent=1 // pred_region
      %353 = dma.done [#allocation4], 128
    $region53: #{tpu_custom_call.1} parent=1 // pred_fallthru
      _
    %354 = vsyncpa [#allocation3], 1
    %355 = vsyncpa [#allocation6], 1
    %356 = vsyncpa [#allocation9], 1
    %357 = vsyncpa [#allocation4], 1

</llo_original>
